<compile_context>
chip_gen: v7x
topology: tpu7x:2x2x1
jax: 0.10.0
libtpu: 0.0.40
codegen_flags: <defaults>
</compile_context>

<pallas_src>
import jax
import jax.numpy as jnp
from jax.experimental import pallas as pl
from jax.experimental.pallas import tpu as pltpu


# --------------------------------------------------------------------------
# Kernel
# --------------------------------------------------------------------------
def _make_swish_kernel(compute_dtype):
    def kernel(x_ref, o_ref):
        xf = x_ref[...].astype(compute_dtype)
        # Exact sigmoid: exp on the EUP, one divide, one multiply on the VPU.
        # For very negative x, exp(-x) -> inf and x / inf -> -0.0 (correct
        # limit); no reliance on the approximate-reciprocal inf behavior.
        y = xf / (1.0 + jnp.exp(-xf))
        o_ref[...] = y.astype(o_ref.dtype)

    return kernel


# --------------------------------------------------------------------------
# Tiling heuristics
# --------------------------------------------------------------------------
def _device_kind() -> str:
    try:
        return jax.devices()[0].device_kind.lower()
    except Exception:
        return ""


def _default_target_block_bytes() -> int:
    # v7x: 8 MiB blocks (per-step DMA ~2.6 us at 4 MiB -> fixed 0.35 us step
    # cost would be ~12%; 8 MiB halves it). v5e/v6e: 4 MiB is already >=85%
    # of the HBM roofline per measured tiling data.
    return (8 << 20) if "v7" in _device_kind() else (4 << 20)


def _compute_dtype(x_dtype):
    # bf16 compute is only profitable/safe on bf16-capable VPU/EUP (v6e, v7x);
    # everywhere else upcast to f32.
    if jnp.dtype(x_dtype) == jnp.dtype(jnp.bfloat16):
        kind = _device_kind()
        if "v6" in kind or "v7" in kind:
            return jnp.bfloat16
    return jnp.float32


def _sublane_multiple(dtype) -> int:
    # Mosaic tiling: (8,128) for 4-byte, (16,128) for 2-byte, (32,128) for 1-byte.
    return {4: 8, 2: 16, 1: 32}.get(jnp.dtype(dtype).itemsize, 8)


def _pick_slab(n: int, m: int):
    """Pick (rows, width): widest lane width such that rows is a multiple of
    the sublane tile m (full vregs, unmasked vld/vst); else any exact width."""
    widths = (2048, 1024, 512, 256, 128)
    for w in widths:
        if n % w == 0 and (n // w) % m == 0:
            return n // w, w
    for w in widths:
        if n % w == 0:
            return n // w, w
    return None


def _round_up(a: int, b: int) -> int:
    return -(-a // b) * b


def _pick_tile_rows(rows: int, m: int, width: int, itemsize: int,
                    target_block_bytes: int) -> int:
    """Row count per block: multiple of m (or the full extent), sized near the
    target byte budget."""
    w_pad = _round_up(width, 128)
    cap = max(m, ((target_block_bytes // (w_pad * itemsize)) // m) * m)

    if rows <= cap:
        # Whole slab fits in one block. Split into a few blocks (when there's
        # room) so writeback of block i-1 overlaps the input DMA of block i+1;
        # grid=(1,) would serialize DMA-in -> compute -> DMA-out.
        if rows >= 2 * m:
            nblk = min(4, rows // m)
            t = _round_up(-(-rows // nblk), m)
            return min(t, rows)
        return rows

    # Prefer an even divisor of rows (every block fully unmasked), but never
    # shrink below half the target: one masked ragged tail block is far
    # cheaper than shrinking every block (0.35 us/step overhead multiplies).
    t = cap
    floor = max(m, (cap // 2 // m) * m)
    while t >= floor:
        if rows % t == 0:
            return t
        t -= m
    return cap  # ragged last block; Pallas masks it


# --------------------------------------------------------------------------
# pallas_call wrapper
# --------------------------------------------------------------------------
def _swish_2d(x2d, tile_rows: int, compute_dtype):
    rows, width = x2d.shape
    itemsize = jnp.dtype(x2d.dtype).itemsize
    w_pad = _round_up(width, 128)
    block_bytes = tile_rows * w_pad * itemsize
    # 2 input + 2 output buffers in flight, plus headroom. Stays well under the
    # 64 MiB per-TC VMEM of v7x even with 8 MiB blocks (36 MiB < 48 MiB).
    vmem_limit = int(min(max(4 * block_bytes + (4 << 20), 16 << 20), 48 << 20))
    grid_len = pl.cdiv(rows, tile_rows)

    kernel = _make_swish_kernel(compute_dtype)

    def build(dim_semantics):
        return pl.pallas_call(
            kernel,
            out_shape=jax.ShapeDtypeStruct((rows, width), x2d.dtype),
            grid_spec=pltpu.PrefetchScalarGridSpec(
                num_scalar_prefetch=0,
                grid=(grid_len,),
                in_specs=[pl.BlockSpec((tile_rows, width), lambda i: (i, 0))],
                out_specs=pl.BlockSpec((tile_rows, width), lambda i: (i, 0)),
            ),
            compiler_params=pltpu.CompilerParams(
                dimension_semantics=dim_semantics,
                vmem_limit_bytes=vmem_limit,
            ),
        )

    # Only CORE_PARALLEL actually splits a grid axis across v7x's two
    # TensorCores; plain "parallel" vs "arbitrary" is a measured no-op, and
    # v5e/v6e have a single TC anyway.
    semantics_options = []
    if ("v7" in _device_kind() and grid_len >= 2 and grid_len % 2 == 0
            and hasattr(pltpu, "CORE_PARALLEL")):
        semantics_options.append((pltpu.CORE_PARALLEL,))
    semantics_options.append(("arbitrary",))

    last_err = None
    for sem in semantics_options:
        try:
            return build(sem)(x2d)
        except Exception as e:  # fall back if CORE_PARALLEL is rejected here
            last_err = e
    raise last_err


def swish(x, *, target_block_bytes=None):
    """Elementwise swish/SiLU over an arbitrary-shaped array: x * sigmoid(x)."""
    orig_shape = x.shape
    n = x.size
    if n == 0:
        return x
    if target_block_bytes is None:
        target_block_bytes = _default_target_block_bytes()
    itemsize = jnp.dtype(x.dtype).itemsize
    m = _sublane_multiple(x.dtype)
    compute_dtype = _compute_dtype(x.dtype)

    slab = _pick_slab(n, m)
    if slab is not None:
        # Fast path (common NCHW case): contiguous reshape only — no pad,
        # no tail slice, minimum HBM traffic; lane-dense, sublane-complete.
        rows, width = slab
        tile_rows = _pick_tile_rows(rows, m, width, itemsize, target_block_bytes)
        out2d = _swish_2d(x.reshape(rows, width), tile_rows, compute_dtype)
        return out2d.reshape(orig_shape)

    # Ragged path (n % 128 != 0): NO pad + slice (each would add a full extra
    # HBM read+write on a bandwidth-bound kernel). Collapse to
    # (prod(leading), last_dim); the last dim is a full-extent block so Pallas
    # masks the ragged lanes, and a ragged last row-block is masked too.
    x2d = x.reshape(1, n) if x.ndim <= 1 else x.reshape(-1, orig_shape[-1])
    rows, width = x2d.shape
    tile_rows = _pick_tile_rows(rows, m, width, itemsize, target_block_bytes)
    out2d = _swish_2d(x2d, tile_rows, compute_dtype)
    return out2d.reshape(orig_shape)


# --------------------------------------------------------------------------
# Demo / correctness check
# --------------------------------------------------------------------------
if __name__ == "__main__":
    key = jax.random.PRNGKey(0)
    # Small NCHW input consistent with typical conv-net usage of Swish.
    x = jax.random.normal(key, (2, 4, 16, 16), dtype=jnp.float32)

    y = swish(x)
    jax.block_until_ready(y)

    # Reference check (plain JAX, exact sigmoid).
    y_ref = x * jax.nn.sigmoid(x)
    assert y.shape == x.shape and y.dtype == x.dtype
    assert jnp.max(jnp.abs(y - y_ref)) < 1e-5

    print("KERNEL_OK")
</pallas_src>

<mosaic_0001>
module attributes {stable_mosaic.version = 11 : i64} {
  func.func @kernel(%arg0: i32, %arg1: memref<8x256xf32, #tpu.memory_space<vmem>>, %arg2: memref<8x256xf32, #tpu.memory_space<vmem>>) attributes {dimension_semantics = [#tpu.dimension_semantics<arbitrary>], iteration_bounds = array<i64: 1>, scalar_prefetch = 0 : i64, scratch_operands = 0 : i64, tpu.core_type = #tpu.core_type<tc>, window_params = [{transform_indices = @transform_0, window_bounds = array<i64: 8, 256>}, {transform_indices = @transform_1, window_bounds = array<i64: 8, 256>}]} {
    %c0 = arith.constant 0 : index
    %c0_0 = arith.constant 0 : index
    %0 = vector.load %arg1[%c0, %c0_0] : memref<8x256xf32, #tpu.memory_space<vmem>>, vector<8x256xf32>
    %cst = arith.constant 0.000000e+00 : f32
    %1 = vector.broadcast %cst : f32 to vector<8x256xf32>
    %2 = arith.subf %1, %0 : vector<8x256xf32>
    %3 = math.exp %2 : vector<8x256xf32>
    %cst_1 = arith.constant 1.000000e+00 : f32
    %4 = vector.broadcast %cst_1 : f32 to vector<8x256xf32>
    %5 = arith.addf %4, %3 : vector<8x256xf32>
    %6 = arith.divf %0, %5 : vector<8x256xf32>
    %c0_2 = arith.constant 0 : index
    %c0_3 = arith.constant 0 : index
    %7 = vector.load %arg2[%c0_2, %c0_3] : memref<8x256xf32, #tpu.memory_space<vmem>>, vector<8x256xf32>
    tpu.vector_store %arg2[%c0_2, %c0_3], %6 {strides = array<i32>} : memref<8x256xf32, #tpu.memory_space<vmem>>, vector<8x256xf32>,
    return
  }
  func.func @transform_0(%arg0: i32) -> (i32, i32) {
    %c0_i32 = arith.constant 0 : i32
    %c0_i32_0 = arith.constant 0 : i32
    return %arg0, %c0_i32 : i32, i32
  }
  func.func @transform_1(%arg0: i32) -> (i32, i32) {
    %c0_i32 = arith.constant 0 : i32
    %c0_i32_0 = arith.constant 0 : i32
    return %arg0, %c0_i32 : i32, i32
  }
}

</mosaic_0001>

<llo_original>
// kernel: tpu_custom_call.1
$region0: #{tpu_custom_call.1}
  #allocation0 [shape = 'u32[]', space=smem, size = 0x4, offset = 0x4, fixed_abs, tag = 'smem constant byte address 0x4 - core index']
  #allocation1 [shape = 'u32[144,128]{1,0:T(1,128)}', space=vmem, size = 0x12000, scoped, tag = 'internal scratch']
  %s0 = inlined_call_operand.hbm [shape: f32[8,256], index: 0, kind: input, shape index: {}]
  %s1 = inlined_call_operand.hbm [shape: f32[8,256], index: 1, kind: output, shape index: {}]
  %s2 = sld [smem:[#allocation0]]
  $region18: #{tpu_custom_call.1} parent=0
    _
  %s4 = ssub.s32 1, %s2
  %s5 = scalar_select 0, %s4, %s2
  $region1: #{tpu_custom_call.1} parent=0
    #allocation2 [shape = 'u8[8192]{0}', space=vmem, size = 0x2000, scoped, tag = 'input window, operand 0, single buffered']
    #allocation3 [shape = 's32[1]{0}', space=sflag, size = 0x4, scoped, tag = 'scoped memory for tpu_custom_call.1']
    #allocation4 [shape = 's32[1]{0}', space=sflag, size = 0x4, scoped, tag = 'scoped memory for tpu_custom_call.1']
    #allocation5 [shape = 'u8[8192]{0}', space=vmem, size = 0x2000, scoped, tag = 'output window, operand 0, single buffered']
    %6 = vsyncpa [#allocation3], 0
    %7 = vsyncpa [#allocation4], 0
    // Predicated region
    $region2: #{tpu_custom_call.1} parent=1 // pred_check
      _
    $region3: #{tpu_custom_call.1} parent=1 // pred_check_branch
      %9 = sbr.rel (0) target = $region5
    $region4: #{tpu_custom_call.1} parent=1 // pred_region
      %s11 = ssub.s32 256, 256
      %12 = vsyncadd [#allocation3], %s11
      %s14 = sshll.u32 [#allocation2], 4
      %s15 = int_to_ptr.vmem [resolvable:$true] %s14
      %17 = dma.hbm_to_vmem [thread:$0]  %s0, 256, %s15, [#allocation3]
    $region5: #{tpu_custom_call.1} parent=1 // pred_fallthru
      _
    // Predicated region
    $region6: #{tpu_custom_call.1} parent=1 // pred_check
      _
    $region7: #{tpu_custom_call.1} parent=1 // pred_check_branch
      %19 = sbr.rel (0) target = $region9
    $region8: #{tpu_custom_call.1} parent=1 // pred_region
      %20 = dma.done [#allocation3], 256
    $region9: #{tpu_custom_call.1} parent=1 // pred_fallthru
      _
    %v21 = vld [vmem:[#allocation2] sm:$0xff]
    %v22 = vld [vmem:[#allocation2 + $0x8] sm:$0xff]
    %v23 = vsub.f32 0.0, %v21
    %v24 = vsub.f32 0.0, %v22
    %v25 = vmul.f32 %v23, 1.442695
    %v26 = vpow.pop %v25
    %v27 = vmul.f32 %v24, 1.442695
    %v28 = vpow.pop %v27
    %v29 = vadd.f32 %v26, 1.0
    %v30 = vadd.f32 %v28, 1.0
    %v31 = vrcp.pop %v29
    %v32 = vmul.f32 %v21, %v31
    %v33 = vrcp.pop %v30
    %v34 = vmul.f32 %v22, %v33
    %35 = vst [vmem:[#allocation5] sm:$0xff] %v32
    %36 = vst [vmem:[#allocation5 + $0x8] sm:$0xff] %v34
    // Predicated region
    $region10: #{tpu_custom_call.1} parent=1 // pred_check
      _
    $region11: #{tpu_custom_call.1} parent=1 // pred_check_branch
      %38 = sbr.rel (0) target = $region13
    $region12: #{tpu_custom_call.1} parent=1 // pred_region
      %s40 = ssub.s32 256, 256
      %41 = vsyncadd [#allocation4], %s40
      %s43 = sshll.u32 [#allocation5], 4
      %s44 = int_to_ptr.vmem [resolvable:$true] %s43
      %46 = dma.vmem_to_hbm [thread:$0]  %s44, 256, %s1, [#allocation4]
    $region13: #{tpu_custom_call.1} parent=1 // pred_fallthru
      _
    // Predicated region
    $region14: #{tpu_custom_call.1} parent=1 // pred_check
      _
    $region15: #{tpu_custom_call.1} parent=1 // pred_check_branch
      %48 = sbr.rel (0) target = $region17
    $region16: #{tpu_custom_call.1} parent=1 // pred_region
      %49 = dma.done [#allocation4], 256
    $region17: #{tpu_custom_call.1} parent=1 // pred_fallthru
      _
    %50 = vsyncpa [#allocation3], 1
    %51 = vsyncpa [#allocation4], 1

</llo_original>
